<compile_context>
chip_gen: v5e
topology: v5e:2x2
jax: 0.10.0
libtpu: 0.0.40
codegen_flags: <defaults>
</compile_context>

<pallas_src>
import functools
import math

import jax
import jax.numpy as jnp
from jax.experimental import pallas as pl
from jax.experimental.pallas import tpu as pltpu

_LANES = 128
_SUBLANES = 8


def _round_up(x, m):
    return ((x + m - 1) // m) * m


def _cdiv(a, b):
    return (a + b - 1) // b


def _pack_factor(*dims):
    """Smallest R such that R*d is a multiple of 128 for every feature dim d."""
    r = 1
    for d in dims:
        r = math.lcm(r, _LANES // math.gcd(_LANES, d))
    return r


def _block_diag(w, r):
    """block_diag(w, ..., w) with r copies — acts per packed logical row."""
    if r == 1:
        return w
    return jnp.kron(jnp.eye(r, dtype=w.dtype), w)


def _vmem_limit_bytes():
    """~75% of per-core VMEM (generation aware: ~48 MiB v7x, ~96 MiB v5e/v6e)."""
    cap = 64 * 1024 * 1024  # safe fallback everywhere
    try:
        info = pltpu.get_tpu_info()
        cap = int(getattr(info, "vmem_capacity_bytes", cap))
    except Exception:
        pass
    return int(cap * 3 // 4)


# ---------------------------------------------------------------------------
# Kernels (one row tile each; weights/biases are resident full-array blocks)
# ---------------------------------------------------------------------------
def _kernel_shortcut(x_ref, w0_ref, b0_ref, w1_ref, b1_ref, ws_ref, o_ref):
    """ResnetBlockFC row tile with a linear shortcut (size_in != size_out)."""
    x = x_ref[...].astype(jnp.float32)
    h = jnp.dot(jnp.maximum(x, 0.0), w0_ref[...],
                preferred_element_type=jnp.float32) + b0_ref[...]
    d = jnp.dot(jnp.maximum(h, 0.0), w1_ref[...],
                preferred_element_type=jnp.float32) + b1_ref[...]
    s = jnp.dot(x, ws_ref[...], preferred_element_type=jnp.float32)
    o_ref[...] = (s + d).astype(o_ref.dtype)


def _kernel_identity(x_ref, w0_ref, b0_ref, w1_ref, b1_ref, o_ref):
    """ResnetBlockFC row tile with identity shortcut (size_in == size_out)."""
    x = x_ref[...].astype(jnp.float32)
    h = jnp.dot(jnp.maximum(x, 0.0), w0_ref[...],
                preferred_element_type=jnp.float32) + b0_ref[...]
    d = jnp.dot(jnp.maximum(h, 0.0), w1_ref[...],
                preferred_element_type=jnp.float32) + b1_ref[...]
    o_ref[...] = (x + d).astype(o_ref.dtype)


# ---------------------------------------------------------------------------
# Jitted forward on pre-packed weights
# ---------------------------------------------------------------------------
@functools.partial(
    jax.jit,
    static_argnames=("r", "size_out", "max_rows_per_tile", "vmem_limit_bytes"))
def _forward(x, w0p, b0p, w1p, b1p, wsp, *, r, size_out, max_rows_per_tile,
             vmem_limit_bytes):
    lead_shape = x.shape[:-1]
    in_feat = x.shape[-1]
    x2 = x.reshape(-1, in_feat)
    n_rows = x2.shape[0]

    kin = w0p.shape[0]            # r * (padded) size_in
    kh = w0p.shape[1]             # r * (padded) size_h
    kout = w1p.shape[1]           # r * (padded) size_out
    in_pad = kin // r             # per-logical-row (padded) input width

    # Feature padding (only non-trivial on the fallback path, where r == 1).
    if in_pad != in_feat:
        x2 = jnp.pad(x2, ((0, 0), (0, in_pad - in_feat)))

    # Pad rows only to a multiple of r (<= r-1 rows). The ragged last grid
    # block handles the remaining sub-tile rows: OOB reads are per-row garbage
    # (rows are independent) and OOB writes are discarded on writeback, so we
    # never materialize a full tile-aligned HBM copy of x or of the output.
    n_pad = _round_up(max(n_rows, 1), r)
    if n_pad != n_rows:
        x2 = jnp.pad(x2, ((0, n_pad - n_rows), (0, 0)))
    n_phys = n_pad // r
    xp = x2.reshape(n_phys, kin)  # free row-major reshape

    act_itemsize = x2.dtype.itemsize
    out_dtype = x2.dtype
    # Sublane alignment of the row tile (8 for f32, 16 for bf16, ...).
    align = _SUBLANES * max(1, 4 // act_itemsize)

    # ---- row-tile sizing from the VMEM budget -----------------------------
    weight_arrays = (w0p, b0p, w1p, b1p) + ((wsp,) if wsp is not None else ())
    weight_bytes = sum(int(a.size) * a.dtype.itemsize for a in weight_arrays)
    headroom = 4 * 1024 * 1024
    avail = max(vmem_limit_bytes - 2 * weight_bytes - headroom, 1 * 1024 * 1024)
    per_row_stream = (kin + kout) * act_itemsize * 2       # double-buffered x/out
    per_row_compute = (kin + kh + 2 * kout) * 4             # f32 temporaries
    per_row = per_row_stream + per_row_compute

    tile_budget = max(align, (avail // per_row) // align * align)
    tile_cap = max(align, (max_rows_per_tile // r) // align * align)
    tile_p = min(tile_budget, _round_up(n_phys, align), tile_cap)

    # Megacore balance (v7x, 2 TCs): keep >=2 (preferably >=4) grid steps.
    n_tiles = _cdiv(n_phys, tile_p)
    if n_phys >= 4 * align:
        min_tiles = 4
    elif n_phys >= 2 * align:
        min_tiles = 2
    else:
        min_tiles = 1
    if n_tiles < min_tiles:
        tile_p = _round_up(_cdiv(n_phys, min_tiles), align)
        n_tiles = _cdiv(n_phys, tile_p)
    grid = (n_tiles,)

    full = lambda a: pl.BlockSpec(a.shape, lambda i: (0, 0))
    in_specs = [
        pl.BlockSpec((tile_p, kin), lambda i: (i, 0)),   # x row tile
        full(w0p), full(b0p), full(w1p), full(b1p),      # resident weights
    ]
    operands = [xp, w0p, b0p, w1p, b1p]
    if wsp is not None:
        in_specs.append(full(wsp))
        operands.append(wsp)
        kernel = _kernel_shortcut
    else:
        kernel = _kernel_identity

    # Cost estimate reflects the packed/expanded MXU work and moved bytes.
    flops = 2 * n_phys * (kin * kh + kh * kout +
                          (kin * kout if wsp is not None else 0))
    bytes_accessed = n_phys * (kin + kout) * act_itemsize + weight_bytes

    out_p = pl.pallas_call(
        kernel,
        out_shape=jax.ShapeDtypeStruct((n_phys, kout), out_dtype),
        grid_spec=pltpu.PrefetchScalarGridSpec(
            num_scalar_prefetch=0,
            grid=grid,
            in_specs=in_specs,
            out_specs=pl.BlockSpec((tile_p, kout), lambda i: (i, 0)),
        ),
        compiler_params=pltpu.CompilerParams(
            dimension_semantics=("parallel",),
            vmem_limit_bytes=vmem_limit_bytes,
        ),
        cost_estimate=pl.CostEstimate(
            flops=flops, transcendentals=0, bytes_accessed=bytes_accessed),
    )(*operands)

    out = out_p.reshape(n_pad, kout // r)[:n_rows, :size_out]
    return out.reshape(*lead_shape, size_out)


# ---------------------------------------------------------------------------
# User-facing block: packs weights once, reused across calls
# ---------------------------------------------------------------------------
class ResnetBlockFC:
    """Pallas-TPU ResnetBlockFC forward. Weight packing is done once here."""

    def __init__(self, params, *, activation_dtype=None,
                 max_rows_per_tile=65536, max_kron_bytes=8 * 1024 * 1024):
        w0 = jnp.asarray(params["w0"], jnp.float32)
        b0 = jnp.asarray(params["b0"], jnp.float32).reshape(1, -1)
        w1 = jnp.asarray(params["w1"], jnp.float32)
        b1 = jnp.asarray(params["b1"], jnp.float32).reshape(1, -1)
        ws = params.get("ws", None)
        if ws is not None:
            ws = jnp.asarray(ws, jnp.float32)

        size_in, size_h = w0.shape
        size_out = w1.shape[1]
        assert b0.shape[1] == size_h and b1.shape[1] == size_out
        if ws is None:
            assert size_in == size_out, "identity shortcut needs size_in == size_out"

        self.size_in, self.size_h, self.size_out = size_in, size_h, size_out
        self.activation_dtype = activation_dtype
        self.max_rows_per_tile = int(max_rows_per_tile)
        self.vmem_limit_bytes = int(_vmem_limit_bytes())

        r = _pack_factor(size_in, size_h, size_out)
        n_w = size_in * size_h + size_h * size_out + (
            size_in * size_out if ws is not None else 0)
        if r > 1 and r * r * n_w * 4 > max_kron_bytes:
            r = 1   # kron expansion too big -> feature-padding fallback below

        if r > 1:
            # Lane-dense packing: r logical rows per physical row, block-diag W.
            self.w0p = _block_diag(w0, r)
            self.w1p = _block_diag(w1, r)
            self.wsp = _block_diag(ws, r) if ws is not None else None
            self.b0p = jnp.tile(b0, (1, r))
            self.b1p = jnp.tile(b1, (1, r))
        else:
            # Zero-pad feature dims to 128-lane multiples: keeps unmasked
            # vld/vst without the quadratic kron blow-up.
            ip = _round_up(size_in, _LANES)
            hp = _round_up(size_h, _LANES)
            op = _round_up(size_out, _LANES)
            self.w0p = jnp.pad(w0, ((0, ip - size_in), (0, hp - size_h)))
            self.w1p = jnp.pad(w1, ((0, hp - size_h), (0, op - size_out)))
            self.wsp = (jnp.pad(ws, ((0, ip - size_in), (0, op - size_out)))
                        if ws is not None else None)
            self.b0p = jnp.pad(b0, ((0, 0), (0, hp - size_h)))
            self.b1p = jnp.pad(b1, ((0, 0), (0, op - size_out)))
        self.r = int(r)

    def __call__(self, x):
        if self.activation_dtype is not None:
            x = x.astype(self.activation_dtype)
        return _forward(x, self.w0p, self.b0p, self.w1p, self.b1p, self.wsp,
                        r=self.r, size_out=self.size_out,
                        max_rows_per_tile=self.max_rows_per_tile,
                        vmem_limit_bytes=self.vmem_limit_bytes)


def resnet_block_fc(x, params, **kwargs):
    """One-shot convenience wrapper. For repeated calls with the same params,
    construct ResnetBlockFC once and reuse it (caches the packed weights)."""
    return ResnetBlockFC(params, **kwargs)(x)


# ---------------------------------------------------------------------------
# Parameter init / reference
# ---------------------------------------------------------------------------
def init_params(key, size_in, size_out=None, size_h=None):
    """Parameter init matching the shapes in ResnetBlockFC.__init__."""
    if size_out is None:
        size_out = size_in
    if size_h is None:
        size_h = min(size_in, size_out)

    k0w, k0b, k1b, ksw = jax.random.split(key, 4)

    lim0 = 1.0 / jnp.sqrt(size_in)
    w0 = jax.random.uniform(k0w, (size_in, size_h), jnp.float32, -lim0, lim0)
    b0 = jax.random.uniform(k0b, (1, size_h), jnp.float32, -lim0, lim0)

    lim1 = 1.0 / jnp.sqrt(size_h)
    w1 = jnp.zeros((size_h, size_out), jnp.float32)   # fc_1 weight zero-init
    b1 = jax.random.uniform(k1b, (1, size_out), jnp.float32, -lim1, lim1)

    params = {"w0": w0, "b0": b0, "w1": w1, "b1": b1}
    if size_in != size_out:
        params["ws"] = jax.random.uniform(
            ksw, (size_in, size_out), jnp.float32, -lim0, lim0)
    return params


def reference(x, params):
    """Pure-JAX reference for correctness checking."""
    h = jnp.maximum(x, 0.0) @ params["w0"] + params["b0"]
    d = jnp.maximum(h, 0.0) @ params["w1"] + params["b1"]
    s = x @ params["ws"] if "ws" in params else x
    return s + d


if __name__ == "__main__":
    key = jax.random.PRNGKey(0)
    kx, kp1, kp2, kx2 = jax.random.split(key, 4)

    B, P, size_in, size_out = 2, 64, 16, 32
    x = jax.random.normal(kx, (B, P, size_in), jnp.float32)

    # Case 1: linear shortcut (size_in != size_out), packed-row layout (r=8)
    params_sc = init_params(kp1, size_in, size_out)
    block_sc = ResnetBlockFC(params_sc)
    out_sc = jax.block_until_ready(block_sc(x))
    ref_sc = reference(x.reshape(-1, size_in), params_sc).reshape(B, P, size_out)
    assert out_sc.shape == (B, P, size_out)
    assert jnp.allclose(out_sc, ref_sc, atol=1e-5, rtol=1e-5)

    # Case 2: identity shortcut (size_in == size_out)
    params_id = init_params(kp2, size_in)
    block_id = ResnetBlockFC(params_id)
    out_id = jax.block_until_ready(block_id(x))
    ref_id = reference(x.reshape(-1, size_in), params_id).reshape(B, P, size_in)
    assert out_id.shape == (B, P, size_in)
    assert jnp.allclose(out_id, ref_id, atol=1e-5, rtol=1e-5)

    # Case 3: row count not a multiple of the pack factor (pad-to-r + ragged
    # last grid block path, no full tile-aligned padding)
    x3 = jax.random.normal(kx2, (2, 50, size_in), jnp.float32)
    out3 = jax.block_until_ready(block_sc(x3))
    ref3 = reference(x3.reshape(-1, size_in), params_sc).reshape(2, 50, size_out)
    assert out3.shape == (2, 50, size_out)
    assert jnp.allclose(out3, ref3, atol=1e-5, rtol=1e-5)

    # Case 4: feature-padding fallback path (kron budget forced to zero)
    block_fp = ResnetBlockFC(params_sc, max_kron_bytes=0)
    out_fp = jax.block_until_ready(block_fp(x))
    assert jnp.allclose(out_fp, ref_sc, atol=1e-5, rtol=1e-5)

    # Case 5: optional bf16 activation streaming (looser numerics, halves HBM)
    block_bf = ResnetBlockFC(params_sc, activation_dtype=jnp.bfloat16)
    out_bf = jax.block_until_ready(block_bf(x))
    assert jnp.allclose(out_bf.astype(jnp.float32), ref_sc, atol=5e-2, rtol=5e-2)

    print("KERNEL_OK")
</pallas_src>

<mosaic_0001>
module attributes {stable_mosaic.version = 11 : i64} {
  func.func @_kernel_shortcut(%arg0: i32, %arg1: memref<8x128xf32, #tpu.memory_space<vmem>>, %arg2: memref<128x128xf32, #tpu.memory_space<vmem>>, %arg3: memref<1x128xf32, #tpu.memory_space<vmem>>, %arg4: memref<128x256xf32, #tpu.memory_space<vmem>>, %arg5: memref<1x256xf32, #tpu.memory_space<vmem>>, %arg6: memref<128x256xf32, #tpu.memory_space<vmem>>, %arg7: memref<8x256xf32, #tpu.memory_space<vmem>>) attributes {dimension_semantics = [#tpu.dimension_semantics<parallel>], iteration_bounds = array<i64: 2>, scalar_prefetch = 0 : i64, scratch_operands = 0 : i64, tpu.core_type = #tpu.core_type<tc>, window_params = [{transform_indices = @transform_0, window_bounds = array<i64: 8, 128>}, {pipeline_mode = #tpu.pipeline_mode<synchronous>, transform_indices = @transform_1, window_bounds = array<i64: 128, 128>}, {pipeline_mode = #tpu.pipeline_mode<synchronous>, transform_indices = @transform_2, window_bounds = array<i64: 1, 128>}, {pipeline_mode = #tpu.pipeline_mode<synchronous>, transform_indices = @transform_3, window_bounds = array<i64: 128, 256>}, {pipeline_mode = #tpu.pipeline_mode<synchronous>, transform_indices = @transform_4, window_bounds = array<i64: 1, 256>}, {pipeline_mode = #tpu.pipeline_mode<synchronous>, transform_indices = @transform_5, window_bounds = array<i64: 128, 256>}, {transform_indices = @transform_6, window_bounds = array<i64: 8, 256>}]} {
    %c0 = arith.constant 0 : index
    %c0_0 = arith.constant 0 : index
    %0 = vector.load %arg1[%c0, %c0_0] : memref<8x128xf32, #tpu.memory_space<vmem>>, vector<8x128xf32>
    %cst = arith.constant 0.000000e+00 : f32
    %1 = vector.broadcast %cst : f32 to vector<8x128xf32>
    %2 = arith.maximumf %0, %1 : vector<8x128xf32>
    %c0_1 = arith.constant 0 : index
    %c0_2 = arith.constant 0 : index
    %3 = vector.load %arg2[%c0_1, %c0_2] : memref<128x128xf32, #tpu.memory_space<vmem>>, vector<128x128xf32>
    %cst_3 = arith.constant dense<0.000000e+00> : vector<8x128xf32>
    %4 = tpu.matmul %2, %3, %cst_3 {dimension_numbers = #tpu.dot_dimension_numbers<[1], [0], [0], [1], [0, 0, 1, 1], [], []>} : vector<8x128xf32>, vector<128x128xf32>, vector<8x128xf32> -> vector<8x128xf32>
    %c0_4 = arith.constant 0 : index
    %c0_5 = arith.constant 0 : index
    %5 = vector.load %arg3[%c0_4, %c0_5] : memref<1x128xf32, #tpu.memory_space<vmem>>, vector<1x128xf32>
    %6 = vector.broadcast %5 : vector<1x128xf32> to vector<8x128xf32>
    %7 = arith.addf %4, %6 : vector<8x128xf32>
    %cst_6 = arith.constant 0.000000e+00 : f32
    %8 = vector.broadcast %cst_6 : f32 to vector<8x128xf32>
    %9 = arith.maximumf %7, %8 : vector<8x128xf32>
    %c0_7 = arith.constant 0 : index
    %c0_8 = arith.constant 0 : index
    %10 = vector.load %arg4[%c0_7, %c0_8] : memref<128x256xf32, #tpu.memory_space<vmem>>, vector<128x256xf32>
    %cst_9 = arith.constant dense<0.000000e+00> : vector<8x256xf32>
    %11 = tpu.matmul %9, %10, %cst_9 {dimension_numbers = #tpu.dot_dimension_numbers<[1], [0], [0], [1], [0, 0, 1, 1], [], []>} : vector<8x128xf32>, vector<128x256xf32>, vector<8x256xf32> -> vector<8x256xf32>
    %c0_10 = arith.constant 0 : index
    %c0_11 = arith.constant 0 : index
    %12 = vector.load %arg5[%c0_10, %c0_11] : memref<1x256xf32, #tpu.memory_space<vmem>>, vector<1x256xf32>
    %13 = vector.broadcast %12 : vector<1x256xf32> to vector<8x256xf32>
    %14 = arith.addf %11, %13 : vector<8x256xf32>
    %c0_12 = arith.constant 0 : index
    %c0_13 = arith.constant 0 : index
    %15 = vector.load %arg6[%c0_12, %c0_13] : memref<128x256xf32, #tpu.memory_space<vmem>>, vector<128x256xf32>
    %cst_14 = arith.constant dense<0.000000e+00> : vector<8x256xf32>
    %16 = tpu.matmul %0, %15, %cst_14 {dimension_numbers = #tpu.dot_dimension_numbers<[1], [0], [0], [1], [0, 0, 1, 1], [], []>} : vector<8x128xf32>, vector<128x256xf32>, vector<8x256xf32> -> vector<8x256xf32>
    %17 = arith.addf %16, %14 : vector<8x256xf32>
    %c0_15 = arith.constant 0 : index
    %c0_16 = arith.constant 0 : index
    %18 = vector.load %arg7[%c0_15, %c0_16] : memref<8x256xf32, #tpu.memory_space<vmem>>, vector<8x256xf32>
    tpu.vector_store %arg7[%c0_15, %c0_16], %17 {strides = array<i32>} : memref<8x256xf32, #tpu.memory_space<vmem>>, vector<8x256xf32>,
    return
  }
  func.func @transform_0(%arg0: i32) -> (i32, i32) {
    %c0_i32 = arith.constant 0 : i32
    %c0_i32_0 = arith.constant 0 : i32
    return %arg0, %c0_i32 : i32, i32
  }
  func.func @transform_1(%arg0: i32) -> (i32, i32) {
    %c0_i32 = arith.constant 0 : i32
    %c0_i32_0 = arith.constant 0 : i32
    %c0_i32_1 = arith.constant 0 : i32
    return %c0_i32, %c0_i32_0 : i32, i32
  }
  func.func @transform_2(%arg0: i32) -> (i32, i32) {
    %c0_i32 = arith.constant 0 : i32
    %c0_i32_0 = arith.constant 0 : i32
    %c0_i32_1 = arith.constant 0 : i32
    return %c0_i32, %c0_i32_0 : i32, i32
  }
  func.func @transform_3(%arg0: i32) -> (i32, i32) {
    %c0_i32 = arith.constant 0 : i32
    %c0_i32_0 = arith.constant 0 : i32
    %c0_i32_1 = arith.constant 0 : i32
    return %c0_i32, %c0_i32_0 : i32, i32
  }
  func.func @transform_4(%arg0: i32) -> (i32, i32) {
    %c0_i32 = arith.constant 0 : i32
    %c0_i32_0 = arith.constant 0 : i32
    %c0_i32_1 = arith.constant 0 : i32
    return %c0_i32, %c0_i32_0 : i32, i32
  }
  func.func @transform_5(%arg0: i32) -> (i32, i32) {
    %c0_i32 = arith.constant 0 : i32
    %c0_i32_0 = arith.constant 0 : i32
    %c0_i32_1 = arith.constant 0 : i32
    return %c0_i32, %c0_i32_0 : i32, i32
  }
  func.func @transform_6(%arg0: i32) -> (i32, i32) {
    %c0_i32 = arith.constant 0 : i32
    %c0_i32_0 = arith.constant 0 : i32
    return %arg0, %c0_i32 : i32, i32
  }
}

</mosaic_0001>

<llo_original>
// kernel: _forward.1
$region0: #{_forward.1}
  #allocation0 [shape = 'u32[]', space=smem, size = 0x4, offset = 0x4, fixed_abs, tag = 'smem constant byte address 0x4 - core index']
  #allocation1 [shape = 'u32[72,128]{1,0:T(1,128)}', space=vmem, size = 0x9000, scoped, tag = 'internal scratch']
  %s0 = inlined_call_operand.vmem [shape: f32[16,128], index: 0, kind: input, shape index: {}]
  %s1 = inlined_call_operand.hbm [shape: f32[128,128], index: 1, kind: input, shape index: {}]
  %s2 = inlined_call_operand.vmem [shape: f32[1,128], index: 2, kind: input, shape index: {}]
  %s3 = inlined_call_operand.vmem [shape: f32[128,256], index: 3, kind: input, shape index: {}]
  %s4 = inlined_call_operand.vmem [shape: f32[1,256], index: 4, kind: input, shape index: {}]
  %s5 = inlined_call_operand.hbm [shape: f32[128,256], index: 5, kind: input, shape index: {}]
  %s6 = inlined_call_operand.vmem [shape: f32[16,256], index: 6, kind: output, shape index: {}]
  %s7 = sld [smem:[#allocation0]]
  $region65: #{_forward.1} parent=0
    _
  %s9 = ssub.s32 1, %s7
  %s10 = scalar_select 0, %s9, %s7
  $region1: #{_forward.1} parent=0
    #allocation2 [shape = 'u8[65536]{0}', space=vmem, size = 0x10000, scoped, tag = 'input window, operand 1, single buffered']
    #allocation3 [shape = 's32[2]{0}', space=sflag, size = 0x8, scoped, tag = 'scoped memory for _forward.1']
    #allocation4 [shape = 'u8[131072]{0}', space=vmem, size = 0x20000, scoped, tag = 'input window, operand 5, single buffered']
    #allocation5 [shape = 's32[1]{0}', space=sflag, size = 0x4, scoped, tag = 'scoped memory for _forward.1']
    %11 = vsyncpa [#allocation3], 0
    %12 = vsyncpa [#allocation5], 0
    loop: start=0, step=1, limit=4
    $region2: #{_forward.1} parent=1 // loop_pre_header
      _
    $region3: #{_forward.1} parent=1 // loop_header
      %s14 = sphi 0, %s18
      %p15 = scmp.ge.s32.totalorder %s14, 4
      %s24 = sphi 0, %s26
      %s27 = sphi 0, %s24
      %s28 = sphi 0, %s27
      %s44 = sphi 0, %s28
      %s48 = sphi 0, %s48
      %s50 = sphi 0, %s48
      %s51 = sphi 0, %s50
      %s65 = sphi 0, %s51
      %s69 = sphi 0, %s69
      %s71 = sphi 0, %s69
      %s72 = sphi 0, %s71
      %s86 = sphi 0, %s72
      %s90 = sphi 0, %s90
      %s92 = sphi 0, %s90
      %s93 = sphi 0, %s92
      %s107 = sphi 0, %s93
      %s111 = sphi 0, %s111
      %s113 = sphi 0, %s111
      %s114 = sphi 0, %s113
      %s128 = sphi 0, %s114
      %s132 = sphi 0, %s132
      %s134 = sphi 0, %s132
      %s135 = sphi 0, %s134
      %s149 = sphi 0, %s135
      %s155 = sphi 0, %s157
      %s158 = sphi 0, %s155
      %s159 = sphi 0, %s158
      %s175 = sphi 0, %s159
    $region4: #{_forward.1} parent=1 // loop_header_branch
      %17 = sbr.rel (%p15) target = $region8
    $region5: #{_forward.1} parent=1 // loop_body
      %s19 = ssub.s32 %s14, 1
      %s20 = ssub.s32 %s14, 2
      %s21 = sadd.s32 %s14, 1
      %s22 = ssub.s32 %s14, %s21
      %p23 = scmp.eq.s32.totalorder %s22, 0
      %s25 = sadd.s32 %s24, 1
      %s26 = scalar_select %p23, %s24, %s25
      %p29 = pneg %p23
      %p30 = scmp.eq.s32.totalorder %s14, 1
      %p31 = por %p29, %p30
      %p32 = scmp.ne.s32.totalorder %s24, %s27
      %p33 = scmp.eq.s32.totalorder %s14, 0
      %p34 = por %p32, %p33
      %p35 = scmp.ne.s32.totalorder %s24, %s27
      %p36 = scmp.eq.s32.totalorder %s19, 1
      %p37 = por %p35, %p36
      %p38 = scmp.ne.s32.totalorder %s27, %s28
      %p39 = scmp.eq.s32.totalorder %s19, 0
      %p40 = por %p38, %p39
      %p41 = scmp.ne.s32.totalorder %s27, %s28
      %p42 = scmp.eq.s32.totalorder %s20, 1
      %p43 = por %p41, %p42
      %p45 = scmp.ne.s32.totalorder %s28, %s44
      %p46 = scmp.eq.s32.totalorder %s20, 0
      %p47 = por %p45, %p46
      %s49 = sadd.s32 %s48, 1
      %p52 = scmp.eq.s32.totalorder %s14, 1
      %p53 = scmp.ne.s32.totalorder %s48, %s50
      %p54 = scmp.eq.s32.totalorder %s14, 0
      %p55 = por %p53, %p54
      %p56 = scmp.ne.s32.totalorder %s48, %s50
      %p57 = scmp.eq.s32.totalorder %s19, 1
      %p58 = por %p56, %p57
      %p59 = scmp.ne.s32.totalorder %s50, %s51
      %p60 = scmp.eq.s32.totalorder %s19, 0
      %p61 = por %p59, %p60
      %p62 = scmp.ne.s32.totalorder %s50, %s51
      %p63 = scmp.eq.s32.totalorder %s20, 1
      %p64 = por %p62, %p63
      %p66 = scmp.ne.s32.totalorder %s51, %s65
      %p67 = scmp.eq.s32.totalorder %s20, 0
      %p68 = por %p66, %p67
      %s70 = sadd.s32 %s69, 1
      %p73 = scmp.eq.s32.totalorder %s14, 1
      %p74 = scmp.ne.s32.totalorder %s69, %s71
      %p75 = scmp.eq.s32.totalorder %s14, 0
      %p76 = por %p74, %p75
      %p77 = scmp.ne.s32.totalorder %s69, %s71
      %p78 = scmp.eq.s32.totalorder %s19, 1
      %p79 = por %p77, %p78
      %p80 = scmp.ne.s32.totalorder %s71, %s72
      %p81 = scmp.eq.s32.totalorder %s19, 0
      %p82 = por %p80, %p81
      %p83 = scmp.ne.s32.totalorder %s71, %s72
      %p84 = scmp.eq.s32.totalorder %s20, 1
      %p85 = por %p83, %p84
      %p87 = scmp.ne.s32.totalorder %s72, %s86
      %p88 = scmp.eq.s32.totalorder %s20, 0
      %p89 = por %p87, %p88
      %s91 = sadd.s32 %s90, 1
      %p94 = scmp.eq.s32.totalorder %s14, 1
      %p95 = scmp.ne.s32.totalorder %s90, %s92
      %p96 = scmp.eq.s32.totalorder %s14, 0
      %p97 = por %p95, %p96
      %p98 = scmp.ne.s32.totalorder %s90, %s92
      %p99 = scmp.eq.s32.totalorder %s19, 1
      %p100 = por %p98, %p99
      %p101 = scmp.ne.s32.totalorder %s92, %s93
      %p102 = scmp.eq.s32.totalorder %s19, 0
      %p103 = por %p101, %p102
      %p104 = scmp.ne.s32.totalorder %s92, %s93
      %p105 = scmp.eq.s32.totalorder %s20, 1
      %p106 = por %p104, %p105
      %p108 = scmp.ne.s32.totalorder %s93, %s107
      %p109 = scmp.eq.s32.totalorder %s20, 0
      %p110 = por %p108, %p109
      %s112 = sadd.s32 %s111, 1
      %p115 = scmp.eq.s32.totalorder %s14, 1
      %p116 = scmp.ne.s32.totalorder %s111, %s113
      %p117 = scmp.eq.s32.totalorder %s14, 0
      %p118 = por %p116, %p117
      %p119 = scmp.ne.s32.totalorder %s111, %s113
      %p120 = scmp.eq.s32.totalorder %s19, 1
      %p121 = por %p119, %p120
      %p122 = scmp.ne.s32.totalorder %s113, %s114
      %p123 = scmp.eq.s32.totalorder %s19, 0
      %p124 = por %p122, %p123
      %p125 = scmp.ne.s32.totalorder %s113, %s114
      %p126 = scmp.eq.s32.totalorder %s20, 1
      %p127 = por %p125, %p126
      %p129 = scmp.ne.s32.totalorder %s114, %s128
      %p130 = scmp.eq.s32.totalorder %s20, 0
      %p131 = por %p129, %p130
      %s133 = sadd.s32 %s132, 1
      %p136 = scmp.eq.s32.totalorder %s14, 1
      %p137 = scmp.ne.s32.totalorder %s132, %s134
      %p138 = scmp.eq.s32.totalorder %s14, 0
      %p139 = por %p137, %p138
      %p140 = scmp.ne.s32.totalorder %s132, %s134
      %p141 = scmp.eq.s32.totalorder %s19, 1
      %p142 = por %p140, %p141
      %p143 = scmp.ne.s32.totalorder %s134, %s135
      %p144 = scmp.eq.s32.totalorder %s19, 0
      %p145 = por %p143, %p144
      %p146 = scmp.ne.s32.totalorder %s134, %s135
      %p147 = scmp.eq.s32.totalorder %s20, 1
      %p148 = por %p146, %p147
      %p150 = scmp.ne.s32.totalorder %s135, %s149
      %p151 = scmp.eq.s32.totalorder %s20, 0
      %p152 = por %p150, %p151
      %s153 = ssub.s32 %s14, %s21
      %p154 = scmp.eq.s32.totalorder %s153, 0
      %s156 = sadd.s32 %s155, 1
      %s157 = scalar_select %p154, %s155, %s156
      %p160 = pneg %p154
      %p161 = scmp.eq.s32.totalorder %s14, 1
      %p162 = por %p160, %p161
      %p163 = scmp.ne.s32.totalorder %s155, %s158
      %p164 = scmp.eq.s32.totalorder %s14, 0
      %p165 = por %p163, %p164
      %p166 = scmp.ne.s32.totalorder %s155, %s158
      %p167 = scmp.eq.s32.totalorder %s19, 1
      %p168 = por %p166, %p167
      %p169 = scmp.ne.s32.totalorder %s158, %s159
      %p170 = scmp.eq.s32.totalorder %s19, 0
      %p171 = por %p169, %p170
      %p172 = scmp.ne.s32.totalorder %s158, %s159
      %p173 = scmp.eq.s32.totalorder %s20, 1
      %p174 = por %p172, %p173
      %p176 = scmp.ne.s32.totalorder %s159, %s175
      %p177 = scmp.eq.s32.totalorder %s20, 0
      %p178 = por %p176, %p177
      %p179 = scmp.le.s32.totalorder 1, %s14
      %p180 = scmp.lt.s32.totalorder %s14, 3
      %p181 = pnand %p179, %p180
      %p182 = pneg %p181
      // Predicated region
      $region9: #{_forward.1} parent=5 // pred_check
        _
      $region10: #{_forward.1} parent=5 // pred_check_branch
        %184 = sbr.rel (%p181) target = $region12
      $region11: #{_forward.1} parent=5 // pred_region
        %s185 = ssub.s32 %s14, 1
        // Predicated region
        $region13: #{_forward.1} parent=11 // pred_check
          %p186 = pneg %p61
        $region14: #{_forward.1} parent=11 // pred_check_branch
          %188 = sbr.rel (%p186) target = $region16
        $region15: #{_forward.1} parent=11 // pred_region
          %190 = vsyncadd [#allocation3], 0
          %s191 = sshll.u32 %s1, 4
          %s192 = int_to_ptr.hbm [resolvable:$true] %s191
          %s193 = sshll.u32 [#allocation2], 4
          %s194 = int_to_ptr.vmem [resolvable:$true] %s193
          %199 = dma.hbm_to_vmem [thread:$0]  %s192, 2048, %s194, [#allocation3], 128, 128, 8
        $region16: #{_forward.1} parent=11 // pred_fallthru
          _
        // Predicated region
        $region17: #{_forward.1} parent=11 // pred_check
          %p200 = pneg %p82
        $region18: #{_forward.1} parent=11 // pred_check_branch
          %202 = sbr.rel (%p200) target = $region20
        $region19: #{_forward.1} parent=11 // pred_region
          _
        $region20: #{_forward.1} parent=11 // pred_fallthru
          _
        // Predicated region
        $region21: #{_forward.1} parent=11 // pred_check
          %p203 = pneg %p103
        $region22: #{_forward.1} parent=11 // pred_check_branch
          %205 = sbr.rel (%p203) target = $region24
        $region23: #{_forward.1} parent=11 // pred_region
          _
        $region24: #{_forward.1} parent=11 // pred_fallthru
          _
        // Predicated region
        $region25: #{_forward.1} parent=11 // pred_check
          %p206 = pneg %p124
        $region26: #{_forward.1} parent=11 // pred_check_branch
          %208 = sbr.rel (%p206) target = $region28
        $region27: #{_forward.1} parent=11 // pred_region
          _
        $region28: #{_forward.1} parent=11 // pred_fallthru
          _
        // Predicated region
        $region29: #{_forward.1} parent=11 // pred_check
          %p209 = pneg %p145
        $region30: #{_forward.1} parent=11 // pred_check_branch
          %211 = sbr.rel (%p209) target = $region32
        $region31: #{_forward.1} parent=11 // pred_region
          %213 = vsyncadd [#allocation5], 0
          %s214 = sshll.u32 %s5, 4
          %s215 = int_to_ptr.hbm [resolvable:$true] %s214
          %s216 = sshll.u32 [#allocation4], 4
          %s217 = int_to_ptr.vmem [resolvable:$true] %s216
          %222 = dma.hbm_to_vmem [thread:$0]  %s215, 4096, %s217, [#allocation5], 256, 256, 16
        $region32: #{_forward.1} parent=11 // pred_fallthru
          _
      $region12: #{_forward.1} parent=5 // pred_fallthru
        _
      %p223 = scmp.lt.s32.totalorder %s14, 2
      // Predicated region
      $region33: #{_forward.1} parent=5 // pred_check
        %p224 = pneg %p223
      $region34: #{_forward.1} parent=5 // pred_check_branch
        %226 = sbr.rel (%p224) target = $region36
      $region35: #{_forward.1} parent=5 // pred_region
        // Predicated region
        $region37: #{_forward.1} parent=35 // pred_check
          %p227 = pneg %p34
        $region38: #{_forward.1} parent=35 // pred_check_branch
          %229 = sbr.rel (%p227) target = $region40
        $region39: #{_forward.1} parent=35 // pred_region
          %p230 = scmp.lt.s32.totalorder %s14, 1
          %s231 = scalar_select %p230, %s14, 1
          %s232 = smul.addr %s231, 8
          %s233 = scalar_lea.vmem %s0, %s232
        $region40: #{_forward.1} parent=35 // pred_fallthru
          _
      $region36: #{_forward.1} parent=5 // pred_fallthru
        _
      %p234 = scmp.le.s32.totalorder 1, %s14
      %p235 = scmp.lt.s32.totalorder %s14, 3
      %p236 = pnand %p234, %p235
      %p237 = pneg %p236
      // Predicated region
      $region41: #{_forward.1} parent=5 // pred_check
        _
      $region42: #{_forward.1} parent=5 // pred_check_branch
        %239 = sbr.rel (%p236) target = $region44
      $region43: #{_forward.1} parent=5 // pred_region
        %s240 = ssub.s32 %s14, 1
        // Predicated region
        $region45: #{_forward.1} parent=43 // pred_check
          %p241 = pneg %p61
        $region46: #{_forward.1} parent=43 // pred_check_branch
          %243 = sbr.rel (%p241) target = $region48
        $region47: #{_forward.1} parent=43 // pred_region
          %245 = dma.done [#allocation3], 2048
        $region48: #{_forward.1} parent=43 // pred_fallthru
          _
        // Predicated region
        $region49: #{_forward.1} parent=43 // pred_check
          %p246 = pneg %p145
        $region50: #{_forward.1} parent=43 // pred_check_branch
          %248 = sbr.rel (%p246) target = $region52
        $region51: #{_forward.1} parent=43 // pred_region
          %250 = dma.done [#allocation5], 4096
        $region52: #{_forward.1} parent=43 // pred_fallthru
          _
        %p251 = scmp.lt.s32.totalorder %s19, 1
        %s252 = scalar_select %p251, %s19, 1
        %s253 = smul.addr %s252, 8
        %s254 = scalar_lea.vmem %s0, %s253
        %p255 = pneg %p40
        %p256 = pneg %p37
        %p257 = pneg %p61
        %p258 = pneg %p58
        %p259 = pneg %p82
        %p260 = pneg %p79
        %p261 = pneg %p103
        %p262 = pneg %p100
        %p263 = pneg %p124
        %p264 = pneg %p121
        %p265 = pneg %p145
        %p266 = pneg %p142
        %p267 = pneg %p171
        %p268 = pneg %p168
        %p269 = scmp.lt.s32.totalorder %s19, 1
        %s270 = scalar_select %p269, %s19, 1
        %s271 = smul.addr %s270, 2
        %s272 = smul.addr %s271, 8
        %s273 = scalar_lea.vmem %s6, %s272
        %p274 = scmp.lt.s32.totalorder %s19, 1
        %s275 = scalar_select %p274, %s19, 1
        %s276 = smul.addr %s275, 8
        %s277 = scalar_lea.vmem %s0, %s276
        %p278 = scmp.lt.s32.totalorder %s19, 1
        %s279 = scalar_select %p278, %s19, 1
        %s280 = smul.addr %s279, 2
        %s281 = smul.addr %s280, 8
        %s282 = scalar_lea.vmem %s6, %s281
        %v283 = vld [vmem:[%s277] sm:$0xff]
        %v284 = vmax.f32 %v283, 0.0
        %v285 = vld [vmem:[#allocation2] sm:$0xff]
        %v286 = vld [vmem:[#allocation2 + $0x8] sm:$0xff]
        %v287 = vld [vmem:[#allocation2 + $0x10] sm:$0xff]
        %v288 = vld [vmem:[#allocation2 + $0x18] sm:$0xff]
        %v289 = vld [vmem:[#allocation2 + $0x20] sm:$0xff]
        %v290 = vld [vmem:[#allocation2 + $0x28] sm:$0xff]
        %v291 = vld [vmem:[#allocation2 + $0x30] sm:$0xff]
        %v292 = vld [vmem:[#allocation2 + $0x38] sm:$0xff]
        %v293 = vld [vmem:[#allocation2 + $0x40] sm:$0xff]
        %v294 = vld [vmem:[#allocation2 + $0x48] sm:$0xff]
        %v295 = vld [vmem:[#allocation2 + $0x50] sm:$0xff]
        %v296 = vld [vmem:[#allocation2 + $0x58] sm:$0xff]
        %v297 = vld [vmem:[#allocation2 + $0x60] sm:$0xff]
        %v298 = vld [vmem:[#allocation2 + $0x68] sm:$0xff]
        %v299 = vld [vmem:[#allocation2 + $0x70] sm:$0xff]
        %v300 = vld [vmem:[#allocation2 + $0x78] sm:$0xff]
        %v301 = vld [vmem:[%s2] sm:$0x1]
        %v303 = vperm.slane %v301, 0
        %305 = vmatpush.msra.mxu0 %v300
        %306 = vmatpush.msra.mxu0 %v299
        %307 = vmatpush.msra.mxu0 %v298
        %308 = vmatpush.msra.mxu0 %v297
        %309 = vmatpush.msra.mxu0 %v296
        %310 = vmatpush.msra.mxu0 %v295
        %311 = vmatpush.msra.mxu0 %v294
        %312 = vmatpush.msra.mxu0 %v293
        %313 = vmatpush.msra.mxu0 %v292
        %314 = vmatpush.msra.mxu0 %v291
        %315 = vmatpush.msra.mxu0 %v290
        %316 = vmatpush.msra.mxu0 %v289
        %317 = vmatpush.msra.mxu0 %v288
        %318 = vmatpush.msra.mxu0 %v287
        %319 = vmatpush.msra.mxu0 %v286
        %320 = vmatpush.msra.mxu0 %v285
        %321 = vmatmul.f32.gmra.mxu0 %v284
        %v322 = vpop.f32.mrf.mxu0
        %v323 = vadd.f32 %v303, %v322
        %324 = vdwg.mxu0
        %v325 = vmax.f32 %v323, 0.0
        %v326 = vld [vmem:[%s3] sm:$0xff]
        %v327 = vld [vmem:[%s3 + $0x8] sm:$0xff]
        %v328 = vld [vmem:[%s3 + $0x10] sm:$0xff]
        %v329 = vld [vmem:[%s3 + $0x18] sm:$0xff]
        %v330 = vld [vmem:[%s3 + $0x20] sm:$0xff]
        %v331 = vld [vmem:[%s3 + $0x28] sm:$0xff]
        %v332 = vld [vmem:[%s3 + $0x30] sm:$0xff]
        %v333 = vld [vmem:[%s3 + $0x38] sm:$0xff]
        %v334 = vld [vmem:[%s3 + $0x40] sm:$0xff]
        %v335 = vld [vmem:[%s3 + $0x48] sm:$0xff]
        %v336 = vld [vmem:[%s3 + $0x50] sm:$0xff]
        %v337 = vld [vmem:[%s3 + $0x58] sm:$0xff]
        %v338 = vld [vmem:[%s3 + $0x60] sm:$0xff]
        %v339 = vld [vmem:[%s3 + $0x68] sm:$0xff]
        %v340 = vld [vmem:[%s3 + $0x70] sm:$0xff]
        %v341 = vld [vmem:[%s3 + $0x78] sm:$0xff]
        %v342 = vld [vmem:[%s3 + $0x80] sm:$0xff]
        %v343 = vld [vmem:[%s3 + $0x88] sm:$0xff]
        %v344 = vld [vmem:[%s3 + $0x90] sm:$0xff]
        %v345 = vld [vmem:[%s3 + $0x98] sm:$0xff]
        %v346 = vld [vmem:[%s3 + $0xa0] sm:$0xff]
        %v347 = vld [vmem:[%s3 + $0xa8] sm:$0xff]
        %v348 = vld [vmem:[%s3 + $0xb0] sm:$0xff]
        %v349 = vld [vmem:[%s3 + $0xb8] sm:$0xff]
        %v350 = vld [vmem:[%s3 + $0xc0] sm:$0xff]
        %v351 = vld [vmem:[%s3 + $0xc8] sm:$0xff]
        %v352 = vld [vmem:[%s3 + $0xd0] sm:$0xff]
        %v353 = vld [vmem:[%s3 + $0xd8] sm:$0xff]
        %v354 = vld [vmem:[%s3 + $0xe0] sm:$0xff]
        %v355 = vld [vmem:[%s3 + $0xe8] sm:$0xff]
        %v356 = vld [vmem:[%s3 + $0xf0] sm:$0xff]
        %v357 = vld [vmem:[%s3 + $0xf8] sm:$0xff]
        %v358 = vld [vmem:[%s4] sm:$0x3]
        %v360 = vperm.slane %v358, 0
        %v361 = vperm.slane %v358, 1
        %364 = vmatpush.msra.mxu0 %v356
        %365 = vmatpush.msra.mxu0 %v354
        %366 = vmatpush.msra.mxu0 %v352
        %367 = vmatpush.msra.mxu0 %v350
        %368 = vmatpush.msra.mxu0 %v348
        %369 = vmatpush.msra.mxu0 %v346
        %370 = vmatpush.msra.mxu0 %v344
        %371 = vmatpush.msra.mxu0 %v342
        %372 = vmatpush.msra.mxu0 %v340
        %373 = vmatpush.msra.mxu0 %v338
        %374 = vmatpush.msra.mxu0 %v336
        %375 = vmatpush.msra.mxu0 %v334
        %376 = vmatpush.msra.mxu0 %v332
        %377 = vmatpush.msra.mxu0 %v330
        %378 = vmatpush.msra.mxu0 %v328
        %379 = vmatpush.msra.mxu0 %v326
        %380 = vmatmul.f32.gmra.mxu0 %v325
        %v381 = vpop.f32.mrf.mxu0
        %v382 = vadd.f32 %v360, %v381
        %383 = vdwg.mxu0
        %384 = vmatpush.msra.mxu0 %v357
        %385 = vmatpush.msra.mxu0 %v355
        %386 = vmatpush.msra.mxu0 %v353
        %387 = vmatpush.msra.mxu0 %v351
        %388 = vmatpush.msra.mxu0 %v349
        %389 = vmatpush.msra.mxu0 %v347
        %390 = vmatpush.msra.mxu0 %v345
        %391 = vmatpush.msra.mxu0 %v343
        %392 = vmatpush.msra.mxu0 %v341
        %393 = vmatpush.msra.mxu0 %v339
        %394 = vmatpush.msra.mxu0 %v337
        %395 = vmatpush.msra.mxu0 %v335
        %396 = vmatpush.msra.mxu0 %v333
        %397 = vmatpush.msra.mxu0 %v331
        %398 = vmatpush.msra.mxu0 %v329
        %399 = vmatpush.msra.mxu0 %v327
        %400 = vmatmul.f32.gmra.mxu0 %v325
        %v401 = vpop.f32.mrf.mxu0
        %v402 = vadd.f32 %v361, %v401
        %403 = vdwg.mxu0
        %v404 = vld [vmem:[#allocation4] sm:$0xff]
        %v405 = vld [vmem:[#allocation4 + $0x8] sm:$0xff]
        %v406 = vld [vmem:[#allocation4 + $0x10] sm:$0xff]
        %v407 = vld [vmem:[#allocation4 + $0x18] sm:$0xff]
        %v408 = vld [vmem:[#allocation4 + $0x20] sm:$0xff]
        %v409 = vld [vmem:[#allocation4 + $0x28] sm:$0xff]
        %v410 = vld [vmem:[#allocation4 + $0x30] sm:$0xff]
        %v411 = vld [vmem:[#allocation4 + $0x38] sm:$0xff]
        %v412 = vld [vmem:[#allocation4 + $0x40] sm:$0xff]
        %v413 = vld [vmem:[#allocation4 + $0x48] sm:$0xff]
        %v414 = vld [vmem:[#allocation4 + $0x50] sm:$0xff]
        %v415 = vld [vmem:[#allocation4 + $0x58] sm:$0xff]
        %v416 = vld [vmem:[#allocation4 + $0x60] sm:$0xff]
        %v417 = vld [vmem:[#allocation4 + $0x68] sm:$0xff]
        %v418 = vld [vmem:[#allocation4 + $0x70] sm:$0xff]
        %v419 = vld [vmem:[#allocation4 + $0x78] sm:$0xff]
        %v420 = vld [vmem:[#allocation4 + $0x80] sm:$0xff]
        %v421 = vld [vmem:[#allocation4 + $0x88] sm:$0xff]
        %v422 = vld [vmem:[#allocation4 + $0x90] sm:$0xff]
        %v423 = vld [vmem:[#allocation4 + $0x98] sm:$0xff]
        %v424 = vld [vmem:[#allocation4 + $0xa0] sm:$0xff]
        %v425 = vld [vmem:[#allocation4 + $0xa8] sm:$0xff]
        %v426 = vld [vmem:[#allocation4 + $0xb0] sm:$0xff]
        %v427 = vld [vmem:[#allocation4 + $0xb8] sm:$0xff]
        %v428 = vld [vmem:[#allocation4 + $0xc0] sm:$0xff]
        %v429 = vld [vmem:[#allocation4 + $0xc8] sm:$0xff]
        %v430 = vld [vmem:[#allocation4 + $0xd0] sm:$0xff]
        %v431 = vld [vmem:[#allocation4 + $0xd8] sm:$0xff]
        %v432 = vld [vmem:[#allocation4 + $0xe0] sm:$0xff]
        %v433 = vld [vmem:[#allocation4 + $0xe8] sm:$0xff]
        %v434 = vld [vmem:[#allocation4 + $0xf0] sm:$0xff]
        %v435 = vld [vmem:[#allocation4 + $0xf8] sm:$0xff]
        %436 = vmatpush.msra.mxu0 %v434
        %437 = vmatpush.msra.mxu0 %v432
        %438 = vmatpush.msra.mxu0 %v430
        %439 = vmatpush.msra.mxu0 %v428
        %440 = vmatpush.msra.mxu0 %v426
        %441 = vmatpush.msra.mxu0 %v424
        %442 = vmatpush.msra.mxu0 %v422
        %443 = vmatpush.msra.mxu0 %v420
        %444 = vmatpush.msra.mxu0 %v418
        %445 = vmatpush.msra.mxu0 %v416
        %446 = vmatpush.msra.mxu0 %v414
        %447 = vmatpush.msra.mxu0 %v412
        %448 = vmatpush.msra.mxu0 %v410
        %449 = vmatpush.msra.mxu0 %v408
        %450 = vmatpush.msra.mxu0 %v406
        %451 = vmatpush.msra.mxu0 %v404
        %452 = vmatmul.f32.gmra.mxu0 %v283
        %v453 = vpop.f32.mrf.mxu0
        %v454 = vadd.f32 %v382, %v453
        %455 = vdwg.mxu0
        %456 = vmatpush.msra.mxu0 %v435
        %457 = vmatpush.msra.mxu0 %v433
        %458 = vmatpush.msra.mxu0 %v431
        %459 = vmatpush.msra.mxu0 %v429
        %460 = vmatpush.msra.mxu0 %v427
        %461 = vmatpush.msra.mxu0 %v425
        %462 = vmatpush.msra.mxu0 %v423
        %463 = vmatpush.msra.mxu0 %v421
        %464 = vmatpush.msra.mxu0 %v419
        %465 = vmatpush.msra.mxu0 %v417
        %466 = vmatpush.msra.mxu0 %v415
        %467 = vmatpush.msra.mxu0 %v413
        %468 = vmatpush.msra.mxu0 %v411
        %469 = vmatpush.msra.mxu0 %v409
        %470 = vmatpush.msra.mxu0 %v407
        %471 = vmatpush.msra.mxu0 %v405
        %472 = vmatmul.f32.gmra.mxu0 %v283
        %v473 = vpop.f32.mrf.mxu0
        %v474 = vadd.f32 %v402, %v473
        %475 = vdwg.mxu0
        %476 = vst [vmem:[%s282] sm:$0xff] %v454
        %477 = vst [vmem:[%s282 + $0x8] sm:$0xff] %v474
        %p478 = scmp.lt.s32.totalorder %s19, 1
        %s479 = scalar_select %p478, %s19, 1
        %s480 = smul.addr %s479, 2
        %s481 = smul.addr %s480, 8
        %s482 = scalar_lea.vmem %s6, %s481
        // Predicated region
        $region53: #{_forward.1} parent=43 // pred_check
          %p483 = pneg %p168
        $region54: #{_forward.1} parent=43 // pred_check_branch
          %485 = sbr.rel (%p483) target = $region56
        $region55: #{_forward.1} parent=43 // pred_region
          _
        $region56: #{_forward.1} parent=43 // pred_fallthru
          _
      $region44: #{_forward.1} parent=5 // pred_fallthru
        _
      %p486 = scmp.le.s32.totalorder 2, %s14
      // Predicated region
      $region57: #{_forward.1} parent=5 // pred_check
        %p487 = pneg %p486
      $region58: #{_forward.1} parent=5 // pred_check_branch
        %489 = sbr.rel (%p487) target = $region60
      $region59: #{_forward.1} parent=5 // pred_region
        %s490 = ssub.s32 %s14, 2
        // Predicated region
        $region61: #{_forward.1} parent=59 // pred_check
          %p491 = pneg %p174
        $region62: #{_forward.1} parent=59 // pred_check_branch
          %493 = sbr.rel (%p491) target = $region64
        $region63: #{_forward.1} parent=59 // pred_region
          %p494 = scmp.lt.s32.totalorder %s20, 1
          %s495 = scalar_select %p494, %s20, 1
          %s496 = smul.addr %s495, 2
          %s497 = smul.addr %s496, 8
          %s498 = scalar_lea.vmem %s6, %s497
        $region64: #{_forward.1} parent=59 // pred_fallthru
          _
      $region60: #{_forward.1} parent=5 // pred_fallthru
        _
    $region6: #{_forward.1} parent=1 // loop_footer
      %s18 = sadd.s32 1, %s14
    $region7: #{_forward.1} parent=1 // loop_footer_branch
      %13 = sbr.rel target = $region3
    $region8: #{_forward.1} parent=1 // loop_exit
      _
    %499 = vsyncpa [#allocation3], 1
    %s500 = scalar_lea.sflag [#allocation3], 1
    %501 = vsyncpa %s500, 1
    %502 = vsyncpa [#allocation5], 1

</llo_original>
